<compile_context>
chip_gen: v7x
topology: tpu7x:2x2x1
jax: 0.10.0
libtpu: 0.0.40
codegen_flags: <defaults>
</compile_context>

<pallas_src>
import jax
import jax.numpy as jnp
from jax.experimental import pallas as pl
from jax.experimental.pallas import tpu as pltpu


def _softplus(x):
    # Matches the module's softplus exactly: log(exp(x) + 1)
    return jnp.log(jnp.exp(x) + 1.0)


def sepnet_kernel(x_ref, w1_ref, b1_ref, w2_ref, b2_ref, w3_ref, b3_ref, o_ref):
    """Full 3-layer split-MLP for one batch tile; branches fused via block-diag weights."""
    x = x_ref[...]                                                    # (tb, 2*in)

    h = _softplus(
        jnp.dot(x, w1_ref[...], preferred_element_type=jnp.float32) + b1_ref[...]
    )                                                                 # (tb, 2*h1)
    h = _softplus(
        jnp.dot(h, w2_ref[...], preferred_element_type=jnp.float32) + b2_ref[...]
    )                                                                 # (tb, 2*h2)
    # Stacked-contraction weight performs the sum over the two branches.
    out = jnp.dot(h, w3_ref[...], preferred_element_type=jnp.float32) + b3_ref[...]
    o_ref[...] = out.astype(o_ref.dtype)                              # single store


def _block_diag2(w):
    """(2, i, o) -> (2*i, 2*o) block-diagonal: diag(w[0], w[1])."""
    i, o = w.shape[1], w.shape[2]
    z = jnp.zeros((i, o), w.dtype)
    top = jnp.concatenate([w[0], z], axis=1)
    bot = jnp.concatenate([z, w[1]], axis=1)
    return jnp.concatenate([top, bot], axis=0)


def sep_net_forward(x, params, *, block_b=512):
    """x: (B, 2*input_size) float32.  params: (w1,b1,w2,b2,w3,b3) with
    wk: (2, in_k, out_k), bk: (2, 1, out_k)."""
    w1, b1, w2, b2, w3, b3 = params
    B, D = x.shape
    in_size = D // 2
    h1 = w1.shape[-1]
    h2 = w2.shape[-1]
    out_size = w3.shape[-1]

    # Fuse the two branches into one weight per layer (tiny, done once per call).
    w1_bd = _block_diag2(w1)                                  # (2*in, 2*h1)
    b1_c = jnp.concatenate([b1[0], b1[1]], axis=-1)           # (1, 2*h1)
    w2_bd = _block_diag2(w2)                                  # (2*h1, 2*h2)
    b2_c = jnp.concatenate([b2[0], b2[1]], axis=-1)           # (1, 2*h2)
    w3_stk = jnp.concatenate([w3[0], w3[1]], axis=0)          # (2*h2, out) -> sums branches
    b3_sum = b3[0] + b3[1]                                    # (1, out)

    tile_b = B if B <= block_b else block_b
    grid = (pl.cdiv(B, tile_b),)

    const = lambda i: (0, 0)   # weights / biases resident across batch tiles

    return pl.pallas_call(
        sepnet_kernel,
        out_shape=jax.ShapeDtypeStruct((B, out_size), jnp.float32),
        grid=grid,
        in_specs=[
            pl.BlockSpec((tile_b, 2 * in_size), lambda i: (i, 0)),   # x
            pl.BlockSpec((2 * in_size, 2 * h1), const),              # W1 block-diag
            pl.BlockSpec((1, 2 * h1), const),                        # b1 concat
            pl.BlockSpec((2 * h1, 2 * h2), const),                   # W2 block-diag
            pl.BlockSpec((1, 2 * h2), const),                        # b2 concat
            pl.BlockSpec((2 * h2, out_size), const),                 # W3 stacked
            pl.BlockSpec((1, out_size), const),                      # b3 summed
        ],
        out_specs=pl.BlockSpec((tile_b, out_size), lambda i: (i, 0)),
        compiler_params=pltpu.CompilerParams(
            dimension_semantics=("parallel",),   # batch tiles independent (v7x 2-TC sharding)
        ),
    )(x, w1_bd, b1_c, w2_bd, b2_c, w3_stk, b3_sum)


def init_split_linear(key, input_size, output_size):
    """Deterministic init mimicking splitBalancedLinear.__init__ shapes/scales."""
    import math
    kw, kb = jax.random.split(key)
    fan_in = input_size
    bound = 1.0 / math.sqrt(fan_in)
    w = jax.random.uniform(
        kw, (2, input_size, output_size), jnp.float32, minval=-bound, maxval=bound
    )
    b = jax.random.uniform(
        kb, (2, 1, output_size), jnp.float32, minval=-bound, maxval=bound
    )
    return w, b


def reference_forward(x, params):
    """Plain-JAX reference replicating the PyTorch forward exactly."""
    w1, b1, w2, b2, w3, b3 = params
    in_size = x.shape[-1] // 2
    xs = jnp.stack((x[:, :in_size], x[:, in_size:]))            # (2, B, in)
    h = _softplus(jnp.einsum("ijk,ikl->ijl", xs, w1) + b1)
    h = _softplus(jnp.einsum("ijk,ikl->ijl", h, w2) + b2)
    o = jnp.einsum("ijk,ikl->ijl", h, w3) + b3
    return jnp.sum(o, axis=0)


if __name__ == "__main__":
    # Small, module-consistent shapes.
    batch = 8
    input_size = 16      # per-branch feature size (x has 2*input_size columns)
    hidden_size1 = 32
    hidden_size2 = 32
    output_size = 8

    key = jax.random.PRNGKey(0)
    kx, k1, k2, k3 = jax.random.split(key, 4)

    x = jax.random.normal(kx, (batch, 2 * input_size), jnp.float32)

    w1, b1 = init_split_linear(k1, input_size, hidden_size1)
    w2, b2 = init_split_linear(k2, hidden_size1, hidden_size2)
    w3, b3 = init_split_linear(k3, hidden_size2, output_size)
    params = (w1, b1, w2, b2, w3, b3)

    out = sep_net_forward(x, params)
    out = jax.block_until_ready(out)

    ref = jax.block_until_ready(reference_forward(x, params))
    assert out.shape == (batch, output_size)
    assert jnp.allclose(out, ref, atol=1e-5, rtol=1e-5), "mismatch vs reference"

    print("KERNEL_OK")
</pallas_src>

<mosaic_0001>
module attributes {stable_mosaic.version = 11 : i64} {
  func.func @sepnet_kernel(%arg0: i32, %arg1: memref<8x32xf32, #tpu.memory_space<vmem>>, %arg2: memref<32x64xf32, #tpu.memory_space<vmem>>, %arg3: memref<1x64xf32, #tpu.memory_space<vmem>>, %arg4: memref<64x64xf32, #tpu.memory_space<vmem>>, %arg5: memref<1x64xf32, #tpu.memory_space<vmem>>, %arg6: memref<64x8xf32, #tpu.memory_space<vmem>>, %arg7: memref<1x8xf32, #tpu.memory_space<vmem>>, %arg8: memref<8x8xf32, #tpu.memory_space<vmem>>) attributes {dimension_semantics = [#tpu.dimension_semantics<parallel>], iteration_bounds = array<i64: 1>, scalar_prefetch = 0 : i64, scratch_operands = 0 : i64, tpu.core_type = #tpu.core_type<tc>, window_params = [{transform_indices = @transform_0, window_bounds = array<i64: 8, 32>}, {pipeline_mode = #tpu.pipeline_mode<synchronous>, transform_indices = @transform_1, window_bounds = array<i64: 32, 64>}, {pipeline_mode = #tpu.pipeline_mode<synchronous>, transform_indices = @transform_2, window_bounds = array<i64: 1, 64>}, {pipeline_mode = #tpu.pipeline_mode<synchronous>, transform_indices = @transform_3, window_bounds = array<i64: 64, 64>}, {pipeline_mode = #tpu.pipeline_mode<synchronous>, transform_indices = @transform_4, window_bounds = array<i64: 1, 64>}, {pipeline_mode = #tpu.pipeline_mode<synchronous>, transform_indices = @transform_5, window_bounds = array<i64: 64, 8>}, {pipeline_mode = #tpu.pipeline_mode<synchronous>, transform_indices = @transform_6, window_bounds = array<i64: 1, 8>}, {transform_indices = @transform_7, window_bounds = array<i64: 8, 8>}]} {
    %c0 = arith.constant 0 : index
    %c0_0 = arith.constant 0 : index
    %0 = vector.load %arg1[%c0, %c0_0] : memref<8x32xf32, #tpu.memory_space<vmem>>, vector<8x32xf32>
    %c0_1 = arith.constant 0 : index
    %c0_2 = arith.constant 0 : index
    %1 = vector.load %arg2[%c0_1, %c0_2] : memref<32x64xf32, #tpu.memory_space<vmem>>, vector<32x64xf32>
    %cst = arith.constant dense<0.000000e+00> : vector<8x64xf32>
    %2 = tpu.matmul %0, %1, %cst {dimension_numbers = #tpu.dot_dimension_numbers<[1], [0], [0], [1], [0, 0, 1, 1], [], []>} : vector<8x32xf32>, vector<32x64xf32>, vector<8x64xf32> -> vector<8x64xf32>
    %c0_3 = arith.constant 0 : index
    %c0_4 = arith.constant 0 : index
    %3 = vector.load %arg3[%c0_3, %c0_4] : memref<1x64xf32, #tpu.memory_space<vmem>>, vector<1x64xf32>
    %4 = vector.broadcast %3 : vector<1x64xf32> to vector<8x64xf32>
    %5 = arith.addf %2, %4 : vector<8x64xf32>
    %6 = math.exp %5 : vector<8x64xf32>
    %cst_5 = arith.constant 1.000000e+00 : f32
    %7 = vector.broadcast %cst_5 : f32 to vector<8x64xf32>
    %8 = arith.addf %6, %7 : vector<8x64xf32>
    %9 = math.log %8 : vector<8x64xf32>
    %c0_6 = arith.constant 0 : index
    %c0_7 = arith.constant 0 : index
    %10 = vector.load %arg4[%c0_6, %c0_7] : memref<64x64xf32, #tpu.memory_space<vmem>>, vector<64x64xf32>
    %cst_8 = arith.constant dense<0.000000e+00> : vector<8x64xf32>
    %11 = tpu.matmul %9, %10, %cst_8 {dimension_numbers = #tpu.dot_dimension_numbers<[1], [0], [0], [1], [0, 0, 1, 1], [], []>} : vector<8x64xf32>, vector<64x64xf32>, vector<8x64xf32> -> vector<8x64xf32>
    %c0_9 = arith.constant 0 : index
    %c0_10 = arith.constant 0 : index
    %12 = vector.load %arg5[%c0_9, %c0_10] : memref<1x64xf32, #tpu.memory_space<vmem>>, vector<1x64xf32>
    %13 = vector.broadcast %12 : vector<1x64xf32> to vector<8x64xf32>
    %14 = arith.addf %11, %13 : vector<8x64xf32>
    %15 = math.exp %14 : vector<8x64xf32>
    %cst_11 = arith.constant 1.000000e+00 : f32
    %16 = vector.broadcast %cst_11 : f32 to vector<8x64xf32>
    %17 = arith.addf %15, %16 : vector<8x64xf32>
    %18 = math.log %17 : vector<8x64xf32>
    %c0_12 = arith.constant 0 : index
    %c0_13 = arith.constant 0 : index
    %19 = vector.load %arg6[%c0_12, %c0_13] : memref<64x8xf32, #tpu.memory_space<vmem>>, vector<64x8xf32>
    %cst_14 = arith.constant dense<0.000000e+00> : vector<8x8xf32>
    %20 = tpu.matmul %18, %19, %cst_14 {dimension_numbers = #tpu.dot_dimension_numbers<[1], [0], [0], [1], [0, 0, 1, 1], [], []>} : vector<8x64xf32>, vector<64x8xf32>, vector<8x8xf32> -> vector<8x8xf32>
    %c0_15 = arith.constant 0 : index
    %c0_16 = arith.constant 0 : index
    %21 = vector.load %arg7[%c0_15, %c0_16] : memref<1x8xf32, #tpu.memory_space<vmem>>, vector<1x8xf32>
    %22 = vector.broadcast %21 : vector<1x8xf32> to vector<8x8xf32>
    %23 = arith.addf %20, %22 : vector<8x8xf32>
    %c0_17 = arith.constant 0 : index
    %c0_18 = arith.constant 0 : index
    %24 = vector.load %arg8[%c0_17, %c0_18] : memref<8x8xf32, #tpu.memory_space<vmem>>, vector<8x8xf32>
    tpu.vector_store %arg8[%c0_17, %c0_18], %23 {strides = array<i32>} : memref<8x8xf32, #tpu.memory_space<vmem>>, vector<8x8xf32>,
    return
  }
  func.func @transform_0(%arg0: i32) -> (i32, i32) {
    %c0_i32 = arith.constant 0 : i32
    %c0_i32_0 = arith.constant 0 : i32
    return %arg0, %c0_i32 : i32, i32
  }
  func.func @transform_1(%arg0: i32) -> (i32, i32) {
    %c0_i32 = arith.constant 0 : i32
    %c0_i32_0 = arith.constant 0 : i32
    %c0_i32_1 = arith.constant 0 : i32
    return %c0_i32, %c0_i32_0 : i32, i32
  }
  func.func @transform_2(%arg0: i32) -> (i32, i32) {
    %c0_i32 = arith.constant 0 : i32
    %c0_i32_0 = arith.constant 0 : i32
    %c0_i32_1 = arith.constant 0 : i32
    return %c0_i32, %c0_i32_0 : i32, i32
  }
  func.func @transform_3(%arg0: i32) -> (i32, i32) {
    %c0_i32 = arith.constant 0 : i32
    %c0_i32_0 = arith.constant 0 : i32
    %c0_i32_1 = arith.constant 0 : i32
    return %c0_i32, %c0_i32_0 : i32, i32
  }
  func.func @transform_4(%arg0: i32) -> (i32, i32) {
    %c0_i32 = arith.constant 0 : i32
    %c0_i32_0 = arith.constant 0 : i32
    %c0_i32_1 = arith.constant 0 : i32
    return %c0_i32, %c0_i32_0 : i32, i32
  }
  func.func @transform_5(%arg0: i32) -> (i32, i32) {
    %c0_i32 = arith.constant 0 : i32
    %c0_i32_0 = arith.constant 0 : i32
    %c0_i32_1 = arith.constant 0 : i32
    return %c0_i32, %c0_i32_0 : i32, i32
  }
  func.func @transform_6(%arg0: i32) -> (i32, i32) {
    %c0_i32 = arith.constant 0 : i32
    %c0_i32_0 = arith.constant 0 : i32
    %c0_i32_1 = arith.constant 0 : i32
    return %c0_i32, %c0_i32_0 : i32, i32
  }
  func.func @transform_7(%arg0: i32) -> (i32, i32) {
    %c0_i32 = arith.constant 0 : i32
    %c0_i32_0 = arith.constant 0 : i32
    return %arg0, %c0_i32 : i32, i32
  }
}

</mosaic_0001>

<llo_original>
// kernel: tpu_custom_call.1
$region0: #{tpu_custom_call.1}
  #allocation0 [shape = 'u32[]', space=smem, size = 0x4, offset = 0x4, fixed_abs, tag = 'smem constant byte address 0x4 - core index']
  #allocation1 [shape = 'u32[144,128]{1,0:T(1,128)}', space=vmem, size = 0x12000, scoped, tag = 'internal scratch']
  %s0 = inlined_call_operand.vmem [shape: f32[8,32], index: 0, kind: input, shape index: {}]
  %s1 = inlined_call_operand.hbm [shape: f32[32,64], index: 1, kind: input, shape index: {}]
  %s2 = inlined_call_operand.vmem [shape: f32[1,64], index: 2, kind: input, shape index: {}]
  %s3 = inlined_call_operand.vmem [shape: f32[64,64], index: 3, kind: input, shape index: {}]
  %s4 = inlined_call_operand.vmem [shape: f32[1,64], index: 4, kind: input, shape index: {}]
  %s5 = inlined_call_operand.vmem [shape: f32[64,8], index: 5, kind: input, shape index: {}]
  %s6 = inlined_call_operand.vmem [shape: f32[1,8], index: 6, kind: input, shape index: {}]
  %s7 = inlined_call_operand.hbm [shape: f32[8,8], index: 7, kind: output, shape index: {}]
  %s8 = sld [smem:[#allocation0]]
  $region42: #{tpu_custom_call.1} parent=0
    _
  %s10 = ssub.s32 1, %s8
  %s11 = scalar_select 0, %s10, %s8
  $region1: #{tpu_custom_call.1} parent=0
    #allocation2 [shape = 'u8[16384]{0}', space=vmem, size = 0x4000, scoped, tag = 'input window, operand 1, single buffered']
    #allocation3 [shape = 's32[1]{0}', space=sflag, size = 0x4, scoped, tag = 'scoped memory for tpu_custom_call.1']
    #allocation4 [shape = 's32[1]{0}', space=sflag, size = 0x4, scoped, tag = 'scoped memory for tpu_custom_call.1']
    #allocation5 [shape = 'u8[4096]{0}', space=vmem, size = 0x1000, scoped, tag = 'output window, operand 0, single buffered']
    %12 = vsyncpa [#allocation3], 0
    %13 = vsyncpa [#allocation4], 0
    // Predicated region
    $region2: #{tpu_custom_call.1} parent=1 // pred_check
      _
    $region3: #{tpu_custom_call.1} parent=1 // pred_check_branch
      %15 = sbr.rel (0) target = $region5
    $region4: #{tpu_custom_call.1} parent=1 // pred_region
      _
    $region5: #{tpu_custom_call.1} parent=1 // pred_fallthru
      _
    // Predicated region
    $region6: #{tpu_custom_call.1} parent=1 // pred_check
      _
    $region7: #{tpu_custom_call.1} parent=1 // pred_check_branch
      %17 = sbr.rel (0) target = $region9
    $region8: #{tpu_custom_call.1} parent=1 // pred_region
      %s19 = ssub.s32 512, 512
      %20 = vsyncadd [#allocation3], %s19
      %s21 = sshll.u32 [#allocation2], 4
      %s22 = int_to_ptr.vmem [resolvable:$true] %s21
      %27 = dma.hbm_to_vmem [thread:$0]  %s1, 512, %s22, [#allocation3], 128, 128, 8
    $region9: #{tpu_custom_call.1} parent=1 // pred_fallthru
      _
    // Predicated region
    $region10: #{tpu_custom_call.1} parent=1 // pred_check
      _
    $region11: #{tpu_custom_call.1} parent=1 // pred_check_branch
      %29 = sbr.rel (0) target = $region13
    $region12: #{tpu_custom_call.1} parent=1 // pred_region
      _
    $region13: #{tpu_custom_call.1} parent=1 // pred_fallthru
      _
    // Predicated region
    $region14: #{tpu_custom_call.1} parent=1 // pred_check
      _
    $region15: #{tpu_custom_call.1} parent=1 // pred_check_branch
      %31 = sbr.rel (0) target = $region17
    $region16: #{tpu_custom_call.1} parent=1 // pred_region
      _
    $region17: #{tpu_custom_call.1} parent=1 // pred_fallthru
      _
    // Predicated region
    $region18: #{tpu_custom_call.1} parent=1 // pred_check
      _
    $region19: #{tpu_custom_call.1} parent=1 // pred_check_branch
      %33 = sbr.rel (0) target = $region21
    $region20: #{tpu_custom_call.1} parent=1 // pred_region
      _
    $region21: #{tpu_custom_call.1} parent=1 // pred_fallthru
      _
    // Predicated region
    $region22: #{tpu_custom_call.1} parent=1 // pred_check
      _
    $region23: #{tpu_custom_call.1} parent=1 // pred_check_branch
      %35 = sbr.rel (0) target = $region25
    $region24: #{tpu_custom_call.1} parent=1 // pred_region
      _
    $region25: #{tpu_custom_call.1} parent=1 // pred_fallthru
      _
    // Predicated region
    $region26: #{tpu_custom_call.1} parent=1 // pred_check
      _
    $region27: #{tpu_custom_call.1} parent=1 // pred_check_branch
      %37 = sbr.rel (0) target = $region29
    $region28: #{tpu_custom_call.1} parent=1 // pred_region
      _
    $region29: #{tpu_custom_call.1} parent=1 // pred_fallthru
      _
    // Predicated region
    $region30: #{tpu_custom_call.1} parent=1 // pred_check
      _
    $region31: #{tpu_custom_call.1} parent=1 // pred_check_branch
      %39 = sbr.rel (0) target = $region33
    $region32: #{tpu_custom_call.1} parent=1 // pred_region
      %40 = dma.done [#allocation3], 512
    $region33: #{tpu_custom_call.1} parent=1 // pred_fallthru
      _
    %v41 = vld [vmem:[%s0] sm:$0xff]
    %v42 = vld [vmem:[#allocation2] sm:$0xff]
    %v43 = vld [vmem:[#allocation2 + $0x8] sm:$0xff]
    %v44 = vld [vmem:[#allocation2 + $0x10] sm:$0xff]
    %v45 = vld [vmem:[#allocation2 + $0x18] sm:$0xff]
    %v46 = vld [vmem:[%s2] sm:$0x1]
    %v48 = vlaneseq
    %v49 = vshrl.u32 %v48, 7
    %v50 = vsub.s32 0, %v49
    %v51 = vrot.slane %v46, %v50
    %vm53 = vcmask 261120
    %v55 = vsel %vm53, %v41, 0
    %57 = vmatprep.subr.mxu0 0.0
    %58 = vmatpush1.msra.mxu0 %v42
    %59 = vmatprep.subr.mxu0 0.0
    %60 = vmatpush1.msra.mxu0 %v43
    %61 = vmatprep.subr.mxu0 0.0
    %62 = vmatpush1.msra.mxu0 %v44
    %63 = vmatprep.subr.mxu0 0.0
    %64 = vmatpush1.msra.mxu0 %v45
    %65 = vmatprep.subr.mxu0 0.0
    %66 = vmatpush1.msra.mxu0 0.0
    %67 = vmatprep.subr.mxu0 0.0
    %68 = vmatpush1.msra.mxu0 0.0
    %69 = vmatprep.subr.mxu0 0.0
    %70 = vmatpush1.msra.mxu0 0.0
    %71 = vmatprep.subr.mxu0 0.0
    %72 = vmatpush1.msra.mxu0 0.0
    %73 = vmatprep.subr.mxu0 0.0
    %74 = vmatpush1.msra.mxu0 0.0
    %75 = vmatprep.subr.mxu0 0.0
    %76 = vmatpush1.msra.mxu0 0.0
    %77 = vmatprep.subr.mxu0 0.0
    %78 = vmatpush1.msra.mxu0 0.0
    %79 = vmatprep.subr.mxu0 0.0
    %80 = vmatpush1.msra.mxu0 0.0
    %81 = vmatprep.subr.mxu0 0.0
    %82 = vmatpush1.msra.mxu0 0.0
    %83 = vmatprep.subr.mxu0 0.0
    %84 = vmatpush1.msra.mxu0 0.0
    %85 = vmatprep.subr.mxu0 0.0
    %86 = vmatpush1.msra.mxu0 0.0
    %87 = vmatprep.subr.mxu0 0.0
    %88 = vmatpush1.msra.mxu0 0.0
    %89 = vmatprep.subr.mxu0 0.0
    %90 = vmatpush1.msra.mxu0 0.0
    %91 = vmatprep.subr.mxu0 0.0
    %92 = vmatpush1.msra.mxu0 0.0
    %93 = vmatprep.subr.mxu0 0.0
    %94 = vmatpush1.msra.mxu0 0.0
    %95 = vmatprep.subr.mxu0 0.0
    %96 = vmatpush1.msra.mxu0 0.0
    %97 = vmatprep.subr.mxu0 0.0
    %98 = vmatpush1.msra.mxu0 0.0
    %99 = vmatprep.subr.mxu0 0.0
    %100 = vmatpush1.msra.mxu0 0.0
    %101 = vmatprep.subr.mxu0 0.0
    %102 = vmatpush1.msra.mxu0 0.0
    %103 = vmatprep.subr.mxu0 0.0
    %104 = vmatpush1.msra.mxu0 0.0
    %105 = vmatprep.subr.mxu0 0.0
    %106 = vmatpush1.msra.mxu0 0.0
    %107 = vmatprep.subr.mxu0 0.0
    %108 = vmatpush1.msra.mxu0 0.0
    %109 = vmatprep.subr.mxu0 0.0
    %110 = vmatpush1.msra.mxu0 0.0
    %111 = vmatprep.subr.mxu0 0.0
    %112 = vmatpush1.msra.mxu0 0.0
    %113 = vmatprep.subr.mxu0 0.0
    %114 = vmatpush1.msra.mxu0 0.0
    %115 = vmatprep.subr.mxu0 0.0
    %116 = vmatpush1.msra.mxu0 0.0
    %117 = vmatprep.subr.mxu0 0.0
    %118 = vmatpush1.msra.mxu0 0.0
    %119 = vmatprep.subr.mxu0 0.0
    %120 = vmatpush1.msra.mxu0 0.0
    %121 = vmatprep.mubr.f32.mxu0 0.0
    %122 = vmatmul.mubr.f32.gmra.mrb[0].mxu0 %v55
    %v123 = vpop.f32.mrb[0].mxu0
    %v124 = vadd.f32 %v51, %v123
    %v125 = vpop.f32.mrb[0].mxu0
    %126 = vdwg.mxu0
    %v127 = vmul.f32 %v124, 1.442695
    %v128 = vpow.pop %v127
    %v129 = vadd.f32 %v128, 1.0
    %v130 = vlog2.pop %v129
    %v131 = vmul.f32 %v130, 0.6931472
    %v132 = vld [vmem:[%s3] sm:$0xff]
    %v133 = vld [vmem:[%s3 + $0x8] sm:$0xff]
    %v134 = vld [vmem:[%s3 + $0x10] sm:$0xff]
    %v135 = vld [vmem:[%s3 + $0x18] sm:$0xff]
    %v136 = vld [vmem:[%s3 + $0x20] sm:$0xff]
    %v137 = vld [vmem:[%s3 + $0x28] sm:$0xff]
    %v138 = vld [vmem:[%s3 + $0x30] sm:$0xff]
    %v139 = vld [vmem:[%s3 + $0x38] sm:$0xff]
    %v140 = vld [vmem:[%s4] sm:$0x1]
    %v142 = vlaneseq
    %v143 = vshrl.u32 %v142, 7
    %v144 = vsub.s32 0, %v143
    %v145 = vrot.slane %v140, %v144
    %vm147 = vcmask 523264
    %v149 = vsel %vm147, %v131, 0
    %151 = vmatprep.subr.mxu0 0.0
    %152 = vmatpush1.msra.mxu0 %v132
    %153 = vmatprep.subr.mxu0 0.0
    %154 = vmatpush1.msra.mxu0 %v133
    %155 = vmatprep.subr.mxu0 0.0
    %156 = vmatpush1.msra.mxu0 %v134
    %157 = vmatprep.subr.mxu0 0.0
    %158 = vmatpush1.msra.mxu0 %v135
    %159 = vmatprep.subr.mxu0 0.0
    %160 = vmatpush1.msra.mxu0 %v136
    %161 = vmatprep.subr.mxu0 0.0
    %162 = vmatpush1.msra.mxu0 %v137
    %163 = vmatprep.subr.mxu0 0.0
    %164 = vmatpush1.msra.mxu0 %v138
    %165 = vmatprep.subr.mxu0 0.0
    %166 = vmatpush1.msra.mxu0 %v139
    %167 = vmatprep.subr.mxu0 0.0
    %168 = vmatpush1.msra.mxu0 0.0
    %169 = vmatprep.subr.mxu0 0.0
    %170 = vmatpush1.msra.mxu0 0.0
    %171 = vmatprep.subr.mxu0 0.0
    %172 = vmatpush1.msra.mxu0 0.0
    %173 = vmatprep.subr.mxu0 0.0
    %174 = vmatpush1.msra.mxu0 0.0
    %175 = vmatprep.subr.mxu0 0.0
    %176 = vmatpush1.msra.mxu0 0.0
    %177 = vmatprep.subr.mxu0 0.0
    %178 = vmatpush1.msra.mxu0 0.0
    %179 = vmatprep.subr.mxu0 0.0
    %180 = vmatpush1.msra.mxu0 0.0
    %181 = vmatprep.subr.mxu0 0.0
    %182 = vmatpush1.msra.mxu0 0.0
    %183 = vmatprep.subr.mxu0 0.0
    %184 = vmatpush1.msra.mxu0 0.0
    %185 = vmatprep.subr.mxu0 0.0
    %186 = vmatpush1.msra.mxu0 0.0
    %187 = vmatprep.subr.mxu0 0.0
    %188 = vmatpush1.msra.mxu0 0.0
    %189 = vmatprep.subr.mxu0 0.0
    %190 = vmatpush1.msra.mxu0 0.0
    %191 = vmatprep.subr.mxu0 0.0
    %192 = vmatpush1.msra.mxu0 0.0
    %193 = vmatprep.subr.mxu0 0.0
    %194 = vmatpush1.msra.mxu0 0.0
    %195 = vmatprep.subr.mxu0 0.0
    %196 = vmatpush1.msra.mxu0 0.0
    %197 = vmatprep.subr.mxu0 0.0
    %198 = vmatpush1.msra.mxu0 0.0
    %199 = vmatprep.subr.mxu0 0.0
    %200 = vmatpush1.msra.mxu0 0.0
    %201 = vmatprep.subr.mxu0 0.0
    %202 = vmatpush1.msra.mxu0 0.0
    %203 = vmatprep.subr.mxu0 0.0
    %204 = vmatpush1.msra.mxu0 0.0
    %205 = vmatprep.subr.mxu0 0.0
    %206 = vmatpush1.msra.mxu0 0.0
    %207 = vmatprep.subr.mxu0 0.0
    %208 = vmatpush1.msra.mxu0 0.0
    %209 = vmatprep.subr.mxu0 0.0
    %210 = vmatpush1.msra.mxu0 0.0
    %211 = vmatprep.subr.mxu0 0.0
    %212 = vmatpush1.msra.mxu0 0.0
    %213 = vmatprep.subr.mxu0 0.0
    %214 = vmatpush1.msra.mxu0 0.0
    %215 = vmatprep.mubr.f32.mxu0 0.0
    %216 = vmatmul.mubr.f32.gmra.mrb[0].mxu0 %v149
    %v217 = vpop.f32.mrb[0].mxu0
    %v218 = vadd.f32 %v145, %v217
    %v219 = vpop.f32.mrb[0].mxu0
    %220 = vdwg.mxu0
    %v221 = vmul.f32 %v218, 1.442695
    %v222 = vpow.pop %v221
    %v223 = vadd.f32 %v222, 1.0
    %v224 = vlog2.pop %v223
    %v225 = vmul.f32 %v224, 0.6931472
    %v226 = vld [vmem:[%s5] sm:$0xff]
    %v227 = vld [vmem:[%s5 + $0x8] sm:$0xff]
    %v228 = vld [vmem:[%s5 + $0x10] sm:$0xff]
    %v229 = vld [vmem:[%s5 + $0x18] sm:$0xff]
    %v230 = vld [vmem:[%s5 + $0x20] sm:$0xff]
    %v231 = vld [vmem:[%s5 + $0x28] sm:$0xff]
    %v232 = vld [vmem:[%s5 + $0x30] sm:$0xff]
    %v233 = vld [vmem:[%s5 + $0x38] sm:$0xff]
    %v234 = vld [vmem:[%s6] sm:$0x1]
    %v236 = vlaneseq
    %v237 = vshrl.u32 %v236, 7
    %v238 = vsub.s32 0, %v237
    %v239 = vrot.slane %v234, %v238
    %v242 = vsel %vm147, %v225, 0
    %244 = vmatprep.subr.mxu0 0.0
    %245 = vmatpush1.msra.mxu0 %v226
    %246 = vmatprep.subr.mxu0 0.0
    %247 = vmatpush1.msra.mxu0 %v227
    %248 = vmatprep.subr.mxu0 0.0
    %249 = vmatpush1.msra.mxu0 %v228
    %250 = vmatprep.subr.mxu0 0.0
    %251 = vmatpush1.msra.mxu0 %v229
    %252 = vmatprep.subr.mxu0 0.0
    %253 = vmatpush1.msra.mxu0 %v230
    %254 = vmatprep.subr.mxu0 0.0
    %255 = vmatpush1.msra.mxu0 %v231
    %256 = vmatprep.subr.mxu0 0.0
    %257 = vmatpush1.msra.mxu0 %v232
    %258 = vmatprep.subr.mxu0 0.0
    %259 = vmatpush1.msra.mxu0 %v233
    %260 = vmatprep.subr.mxu0 0.0
    %261 = vmatpush1.msra.mxu0 0.0
    %262 = vmatprep.subr.mxu0 0.0
    %263 = vmatpush1.msra.mxu0 0.0
    %264 = vmatprep.subr.mxu0 0.0
    %265 = vmatpush1.msra.mxu0 0.0
    %266 = vmatprep.subr.mxu0 0.0
    %267 = vmatpush1.msra.mxu0 0.0
    %268 = vmatprep.subr.mxu0 0.0
    %269 = vmatpush1.msra.mxu0 0.0
    %270 = vmatprep.subr.mxu0 0.0
    %271 = vmatpush1.msra.mxu0 0.0
    %272 = vmatprep.subr.mxu0 0.0
    %273 = vmatpush1.msra.mxu0 0.0
    %274 = vmatprep.subr.mxu0 0.0
    %275 = vmatpush1.msra.mxu0 0.0
    %276 = vmatprep.subr.mxu0 0.0
    %277 = vmatpush1.msra.mxu0 0.0
    %278 = vmatprep.subr.mxu0 0.0
    %279 = vmatpush1.msra.mxu0 0.0
    %280 = vmatprep.subr.mxu0 0.0
    %281 = vmatpush1.msra.mxu0 0.0
    %282 = vmatprep.subr.mxu0 0.0
    %283 = vmatpush1.msra.mxu0 0.0
    %284 = vmatprep.subr.mxu0 0.0
    %285 = vmatpush1.msra.mxu0 0.0
    %286 = vmatprep.subr.mxu0 0.0
    %287 = vmatpush1.msra.mxu0 0.0
    %288 = vmatprep.subr.mxu0 0.0
    %289 = vmatpush1.msra.mxu0 0.0
    %290 = vmatprep.subr.mxu0 0.0
    %291 = vmatpush1.msra.mxu0 0.0
    %292 = vmatprep.subr.mxu0 0.0
    %293 = vmatpush1.msra.mxu0 0.0
    %294 = vmatprep.subr.mxu0 0.0
    %295 = vmatpush1.msra.mxu0 0.0
    %296 = vmatprep.subr.mxu0 0.0
    %297 = vmatpush1.msra.mxu0 0.0
    %298 = vmatprep.subr.mxu0 0.0
    %299 = vmatpush1.msra.mxu0 0.0
    %300 = vmatprep.subr.mxu0 0.0
    %301 = vmatpush1.msra.mxu0 0.0
    %302 = vmatprep.subr.mxu0 0.0
    %303 = vmatpush1.msra.mxu0 0.0
    %304 = vmatprep.subr.mxu0 0.0
    %305 = vmatpush1.msra.mxu0 0.0
    %306 = vmatprep.subr.mxu0 0.0
    %307 = vmatpush1.msra.mxu0 0.0
    %308 = vmatprep.mubr.f32.mxu0 0.0
    %309 = vmatmul.mubr.f32.gmra.mrb[0].mxu0 %v242
    %v310 = vpop.f32.mrb[0].mxu0
    %v311 = vadd.f32 %v239, %v310
    %v312 = vpop.f32.mrb[0].mxu0
    %313 = vdwg.mxu0
    %vm314 = vcmask 64512
    %315 = vst.msk [vmem:[#allocation5] sm:$0xff] %vm314, %v311
    // Predicated region
    $region34: #{tpu_custom_call.1} parent=1 // pred_check
      _
    $region35: #{tpu_custom_call.1} parent=1 // pred_check_branch
      %317 = sbr.rel (0) target = $region37
    $region36: #{tpu_custom_call.1} parent=1 // pred_region
      %s319 = ssub.s32 128, 128
      %320 = vsyncadd [#allocation4], %s319
      %s322 = sshll.u32 [#allocation5], 4
      %s323 = int_to_ptr.vmem [resolvable:$true] %s322
      %325 = dma.vmem_to_hbm [thread:$0]  %s323, 128, %s7, [#allocation4]
    $region37: #{tpu_custom_call.1} parent=1 // pred_fallthru
      _
    // Predicated region
    $region38: #{tpu_custom_call.1} parent=1 // pred_check
      _
    $region39: #{tpu_custom_call.1} parent=1 // pred_check_branch
      %327 = sbr.rel (0) target = $region41
    $region40: #{tpu_custom_call.1} parent=1 // pred_region
      %328 = dma.done [#allocation4], 128
    $region41: #{tpu_custom_call.1} parent=1 // pred_fallthru
      _
    %329 = vsyncpa [#allocation3], 1
    %330 = vsyncpa [#allocation4], 1

</llo_original>
